<compile_context>
chip_gen: v7x
topology: tpu7x:2x2x1
jax: 0.10.0
libtpu: 0.0.40
codegen_flags: <defaults>
</compile_context>

<pallas_src>
import functools

import jax
import jax.numpy as jnp
from jax.experimental import pallas as pl
from jax.experimental.pallas import tpu as pltpu


def _round_up(x, m):
    return ((x + m - 1) // m) * m


# ----------------------------- Pallas kernel ------------------------------ #
def _goden_decoder_kernel(d, x_ref, w_fused_ref, b_fused_ref,
                          w_out_ref, b_out_ref, out_ref, fused_ref):
    """Fused time-projection + gated fusion (hoisted) + user-vocab matmul."""
    j = pl.program_id(1)

    # Compute the gated fusion once per row tile (j == 0) and cache it in VMEM.
    @pl.when(j == 0)
    def _():
        # Single MXU pass over K = D + P:
        #   [u | tf] @ [[Wg_u, 0], [Wt@Wg_t, Wt]] + b'  ->  [gate_logits | t]
        xt = (jnp.dot(x_ref[...], w_fused_ref[...],
                      preferred_element_type=jnp.float32)
              + b_fused_ref[...])                                  # (tm, 2D) f32
        gate_logits = xt[:, :d]                                    # (tm, D)
        t = xt[:, d:]                                              # (tm, D)
        u = x_ref[:, :d].astype(jnp.float32)                       # (tm, D)
        gate = jax.nn.sigmoid(gate_logits)                         # f32 VPU/EUP
        fused = gate * u + (1.0 - gate) * t                        # f32 blend
        fused_ref[...] = fused.astype(fused_ref.dtype)             # bf16 scratch

    # Dominant matmul: (tm, D) x (D, tn) column tile of the user vocabulary.
    out_ref[...] = (jnp.dot(fused_ref[...], w_out_ref[...],
                            preferred_element_type=jnp.float32)
                    + b_out_ref[...])                              # (tm, tn) f32


def goden_decoder(u, tf, params, *, tm_max=256, tn_max=512):
    """Tiled pallas_call: grid = (row tiles, lane-dense output-column tiles)."""
    n, d = u.shape
    p = tf.shape[1]
    user_size = params["w_out"].shape[1]

    # ---- fold the three small-K matmuls into one (exact) -------------------
    w_gu = params["w_gate_u"].astype(jnp.float32)
    w_gt = params["w_gate_t"].astype(jnp.float32)
    w_t = params["w_time"].astype(jnp.float32)
    b_t = params["b_time"].astype(jnp.float32)
    b_g = params["b_gate"].astype(jnp.float32)

    w_fused = jnp.concatenate(
        [jnp.concatenate([w_gu, jnp.zeros((d, d), jnp.float32)], axis=1),
         jnp.concatenate([w_t @ w_gt, w_t], axis=1)],
        axis=0).astype(jnp.bfloat16)                                # (D+P, 2D)
    b_fused = jnp.concatenate([b_t @ w_gt + b_g, b_t], axis=1)      # (1, 2D) f32

    x = jnp.concatenate([u, tf], axis=1).astype(jnp.bfloat16)       # (N, D+P)
    w_out = params["w_out"].astype(jnp.bfloat16)                    # (D, U)
    b_out = params["b_out"].astype(jnp.float32)                     # (1, U)

    # ---- tile sizes + padding (lane-dense >=128-wide output tiles) ---------
    tm = min(tm_max, _round_up(n, 16))                # bf16 sublane packing
    tn = min(tn_max, _round_up(user_size, 128))       # unmasked vst stores
    n_pad = _round_up(n, tm)
    u_pad = _round_up(user_size, tn)

    if n_pad != n:
        x = jnp.pad(x, ((0, n_pad - n), (0, 0)))
    if u_pad != user_size:
        w_out = jnp.pad(w_out, ((0, 0), (0, u_pad - user_size)))
        b_out = jnp.pad(b_out, ((0, 0), (0, u_pad - user_size)))

    kp = d + p
    grid = (n_pad // tm, u_pad // tn)

    out = pl.pallas_call(
        functools.partial(_goden_decoder_kernel, d),
        out_shape=jax.ShapeDtypeStruct((n_pad, u_pad), jnp.float32),
        grid_spec=pltpu.PrefetchScalarGridSpec(
            num_scalar_prefetch=0,
            grid=grid,
            in_specs=[
                pl.BlockSpec((tm, kp), lambda i, j: (i, 0)),        # X row tile
                pl.BlockSpec((kp, 2 * d), lambda i, j: (0, 0)),     # fused W (resident)
                pl.BlockSpec((1, 2 * d), lambda i, j: (0, 0)),      # fused bias (resident)
                pl.BlockSpec((d, tn), lambda i, j: (0, j)),         # w_out column tile
                pl.BlockSpec((1, tn), lambda i, j: (0, j)),         # b_out column tile
            ],
            out_specs=pl.BlockSpec((tm, tn), lambda i, j: (i, j)),
            scratch_shapes=[pltpu.VMEM((tm, d), jnp.bfloat16)],     # fused acts
        ),
        compiler_params=pltpu.CompilerParams(
            dimension_semantics=("parallel", "arbitrary")),
    )(x, w_fused, b_fused, w_out, b_out)

    # Slice padded rows / padded vocabulary columns back off.
    return out[:n, :user_size]


# ------------------------------ JAX glue ---------------------------------- #
def sinusoidal_time_features(timestamps, pos_dim):
    """(B, S) timestamps -> (B, S, pos_dim) sin/cos features."""
    assert pos_dim % 2 == 0, "pos_dim must be even for sin/cos features"
    half = pos_dim // 2
    i = jnp.arange(half, dtype=jnp.float32)
    inv_freq = 1.0 / (10000.0 ** (2.0 * i / pos_dim))               # (half,)
    ang = timestamps[..., None] * inv_freq                          # (B, S, half)
    return jnp.concatenate([jnp.sin(ang), jnp.cos(ang)], axis=-1)


def init_params(key, user_size, ninp, pos_dim):
    ks = jax.random.split(key, 6)
    scale = 0.05
    return {
        "user_emb":  scale * jax.random.normal(ks[0], (user_size, ninp), jnp.float32),
        "w_time":    scale * jax.random.normal(ks[1], (pos_dim, ninp), jnp.float32),
        "b_time":    jnp.zeros((1, ninp), jnp.float32),
        "w_gate_u":  scale * jax.random.normal(ks[2], (ninp, ninp), jnp.float32),
        "w_gate_t":  scale * jax.random.normal(ks[3], (ninp, ninp), jnp.float32),
        "b_gate":    jnp.zeros((1, ninp), jnp.float32),
        "w_out":     scale * jax.random.normal(ks[4], (ninp, user_size), jnp.float32),
        "b_out":     jnp.zeros((1, user_size), jnp.float32),
    }


def _embed_and_featurize(params, inputs, input_timestamp, pos_dim):
    """Encoder lookup + TimeEncoder sinusoidal features, flattened to rows."""
    seq_inputs = inputs[:, :-1]                          # (B, S): drop last token
    seq_ts = input_timestamp[:, :-1]                     # (B, S)
    b, s = seq_inputs.shape
    d = params["user_emb"].shape[1]
    u = jnp.take(params["user_emb"], seq_inputs, axis=0).reshape(b * s, d)
    tf = sinusoidal_time_features(seq_ts, pos_dim).reshape(b * s, pos_dim)
    return u, tf


def goden_forward(params, inputs, input_timestamp, pos_dim):
    """Mirrors GODEN.forward (eval path): returns user_pred of shape
    (batch * (dim - 1), user_size)."""
    # TODO(synk): dropout / static_graph / diffusion_graph message passing of
    # the original Encoder are not reproduced (eval path, no graph inputs).
    u, tf = _embed_and_featurize(params, inputs, input_timestamp, pos_dim)
    return goden_decoder(u, tf, params)                  # (B*S, user_size)


def goden_reference(params, inputs, input_timestamp, pos_dim):
    """Pure-JAX f32 reference of the same forward (correctness gate)."""
    u, tf = _embed_and_featurize(params, inputs, input_timestamp, pos_dim)
    t = tf @ params["w_time"] + params["b_time"]
    gate = jax.nn.sigmoid(u @ params["w_gate_u"] + t @ params["w_gate_t"]
                          + params["b_gate"])
    fused = gate * u + (1.0 - gate) * t
    return fused @ params["w_out"] + params["b_out"]


# --------------------------------- main ------------------------------------ #
if __name__ == "__main__":
    batch = 2
    cascade_len = 9          # "dim" in the PyTorch forward; seq = dim - 1 = 8
    user_size = 64
    ninp = 32                # d_word_vec
    pos_dim = 8

    key = jax.random.PRNGKey(0)
    k_param, k_inp, k_ts = jax.random.split(key, 3)

    params = init_params(k_param, user_size, ninp, pos_dim)

    inputs = jax.random.randint(k_inp, (batch, cascade_len), 0, user_size,
                                dtype=jnp.int32)
    input_timestamp = jnp.sort(
        jax.random.uniform(k_ts, (batch, cascade_len), jnp.float32, 0.0, 100.0),
        axis=-1)

    user_pred = goden_forward(params, inputs, input_timestamp, pos_dim)
    user_pred = jax.block_until_ready(user_pred)

    assert user_pred.shape == (batch * (cascade_len - 1), user_size)
    assert bool(jnp.all(jnp.isfinite(user_pred)))

    # Correctness gate against a pure-JAX f32 reference (bf16 matmul tolerance).
    ref = goden_reference(params, inputs, input_timestamp, pos_dim)
    max_err = float(jnp.max(jnp.abs(user_pred - ref)))
    ref_scale = float(jnp.max(jnp.abs(ref))) + 1e-6
    assert max_err / ref_scale < 0.05, (max_err, ref_scale)

    print("KERNEL_OK")
</pallas_src>

<mosaic_0001>
module attributes {stable_mosaic.version = 11 : i64} {
  func.func @_goden_decoder_kernel(%arg0: i32, %arg1: i32, %arg2: memref<16x40xbf16, #tpu.memory_space<vmem>>, %arg3: memref<40x64xbf16, #tpu.memory_space<vmem>>, %arg4: memref<1x64xf32, #tpu.memory_space<vmem>>, %arg5: memref<32x128xbf16, #tpu.memory_space<vmem>>, %arg6: memref<1x128xf32, #tpu.memory_space<vmem>>, %arg7: memref<16x128xf32, #tpu.memory_space<vmem>>, %arg8: memref<16x32xbf16, #tpu.memory_space<vmem>>) attributes {dimension_semantics = [#tpu.dimension_semantics<parallel>, #tpu.dimension_semantics<arbitrary>], iteration_bounds = array<i64: 1, 1>, scalar_prefetch = 0 : i64, scratch_operands = 1 : i64, tpu.core_type = #tpu.core_type<tc>, window_params = [{transform_indices = @transform_0, window_bounds = array<i64: 16, 40>}, {pipeline_mode = #tpu.pipeline_mode<synchronous>, transform_indices = @transform_1, window_bounds = array<i64: 40, 64>}, {pipeline_mode = #tpu.pipeline_mode<synchronous>, transform_indices = @transform_2, window_bounds = array<i64: 1, 64>}, {transform_indices = @transform_3, window_bounds = array<i64: 32, 128>}, {transform_indices = @transform_4, window_bounds = array<i64: 1, 128>}, {transform_indices = @transform_5, window_bounds = array<i64: 16, 128>}]} {
    %c0_i32 = arith.constant 0 : i32
    %0 = arith.cmpi eq, %arg1, %c0_i32 : i32
    %1 = arith.extui %0 : i1 to i32
    %c0_i32_0 = arith.constant 0 : i32
    %2 = arith.cmpi ne, %1, %c0_i32_0 : i32
    scf.if %2 {
      %c0_8 = arith.constant 0 : index
      %c0_9 = arith.constant 0 : index
      %10 = vector.load %arg2[%c0_8, %c0_9] : memref<16x40xbf16, #tpu.memory_space<vmem>>, vector<16x40xbf16>
      %c0_10 = arith.constant 0 : index
      %c0_11 = arith.constant 0 : index
      %11 = vector.load %arg3[%c0_10, %c0_11] : memref<40x64xbf16, #tpu.memory_space<vmem>>, vector<40x64xbf16>
      %cst_12 = arith.constant dense<0.000000e+00> : vector<16x64xf32>
      %12 = tpu.matmul %10, %11, %cst_12 {dimension_numbers = #tpu.dot_dimension_numbers<[1], [0], [0], [1], [0, 0, 1, 1], [], []>} : vector<16x40xbf16>, vector<40x64xbf16>, vector<16x64xf32> -> vector<16x64xf32>
      %c0_13 = arith.constant 0 : index
      %c0_14 = arith.constant 0 : index
      %13 = vector.load %arg4[%c0_13, %c0_14] : memref<1x64xf32, #tpu.memory_space<vmem>>, vector<1x64xf32>
      %14 = vector.broadcast %13 : vector<1x64xf32> to vector<16x64xf32>
      %15 = arith.addf %12, %14 : vector<16x64xf32>
      %16 = vector.extract_strided_slice %15 {offsets = [0, 0], sizes = [16, 32], strides = [1, 1]} : vector<16x64xf32> to vector<16x32xf32>
      %17 = vector.extract_strided_slice %15 {offsets = [0, 32], sizes = [16, 32], strides = [1, 1]} : vector<16x64xf32> to vector<16x32xf32>
      %c0_15 = arith.constant 0 : index
      %c0_16 = arith.constant 0 : index
      %18 = vector.load %arg2[%c0_15, %c0_16] : memref<16x40xbf16, #tpu.memory_space<vmem>>, vector<16x32xbf16>
      %19 = arith.extf %18 : vector<16x32xbf16> to vector<16x32xf32>
      %20 = arith.negf %16 : vector<16x32xf32>
      %21 = math.exp %20 : vector<16x32xf32>
      %cst_17 = arith.constant 1.000000e+00 : f32
      %22 = vector.broadcast %cst_17 : f32 to vector<16x32xf32>
      %23 = arith.addf %22, %21 : vector<16x32xf32>
      %24 = arith.divf %22, %23 : vector<16x32xf32>
      %25 = arith.mulf %24, %19 : vector<16x32xf32>
      %cst_18 = arith.constant 1.000000e+00 : f32
      %26 = vector.broadcast %cst_18 : f32 to vector<16x32xf32>
      %27 = arith.subf %26, %24 : vector<16x32xf32>
      %28 = arith.mulf %27, %17 : vector<16x32xf32>
      %29 = arith.addf %25, %28 : vector<16x32xf32>
      %30 = arith.truncf %29 : vector<16x32xf32> to vector<16x32xbf16>
      %c0_19 = arith.constant 0 : index
      %c0_20 = arith.constant 0 : index
      %31 = vector.load %arg8[%c0_19, %c0_20] : memref<16x32xbf16, #tpu.memory_space<vmem>>, vector<16x32xbf16>
      tpu.vector_store %arg8[%c0_19, %c0_20], %30 {strides = array<i32>} : memref<16x32xbf16, #tpu.memory_space<vmem>>, vector<16x32xbf16>,
    } else {
    }
    %c0 = arith.constant 0 : index
    %c0_1 = arith.constant 0 : index
    %3 = vector.load %arg8[%c0, %c0_1] : memref<16x32xbf16, #tpu.memory_space<vmem>>, vector<16x32xbf16>
    %c0_2 = arith.constant 0 : index
    %c0_3 = arith.constant 0 : index
    %4 = vector.load %arg5[%c0_2, %c0_3] : memref<32x128xbf16, #tpu.memory_space<vmem>>, vector<32x128xbf16>
    %cst = arith.constant dense<0.000000e+00> : vector<16x128xf32>
    %5 = tpu.matmul %3, %4, %cst {dimension_numbers = #tpu.dot_dimension_numbers<[1], [0], [0], [1], [0, 0, 1, 1], [], []>} : vector<16x32xbf16>, vector<32x128xbf16>, vector<16x128xf32> -> vector<16x128xf32>
    %c0_4 = arith.constant 0 : index
    %c0_5 = arith.constant 0 : index
    %6 = vector.load %arg6[%c0_4, %c0_5] : memref<1x128xf32, #tpu.memory_space<vmem>>, vector<1x128xf32>
    %7 = vector.broadcast %6 : vector<1x128xf32> to vector<16x128xf32>
    %8 = arith.addf %5, %7 : vector<16x128xf32>
    %c0_6 = arith.constant 0 : index
    %c0_7 = arith.constant 0 : index
    %9 = vector.load %arg7[%c0_6, %c0_7] : memref<16x128xf32, #tpu.memory_space<vmem>>, vector<16x128xf32>
    tpu.vector_store %arg7[%c0_6, %c0_7], %8 {strides = array<i32>} : memref<16x128xf32, #tpu.memory_space<vmem>>, vector<16x128xf32>,
    return
  }
  func.func @transform_0(%arg0: i32, %arg1: i32) -> (i32, i32) {
    %c0_i32 = arith.constant 0 : i32
    %c0_i32_0 = arith.constant 0 : i32
    return %arg0, %c0_i32 : i32, i32
  }
  func.func @transform_1(%arg0: i32, %arg1: i32) -> (i32, i32) {
    %c0_i32 = arith.constant 0 : i32
    %c0_i32_0 = arith.constant 0 : i32
    %c0_i32_1 = arith.constant 0 : i32
    return %c0_i32, %c0_i32_0 : i32, i32
  }
  func.func @transform_2(%arg0: i32, %arg1: i32) -> (i32, i32) {
    %c0_i32 = arith.constant 0 : i32
    %c0_i32_0 = arith.constant 0 : i32
    %c0_i32_1 = arith.constant 0 : i32
    return %c0_i32, %c0_i32_0 : i32, i32
  }
  func.func @transform_3(%arg0: i32, %arg1: i32) -> (i32, i32) {
    %c0_i32 = arith.constant 0 : i32
    %c0_i32_0 = arith.constant 0 : i32
    return %c0_i32, %arg1 : i32, i32
  }
  func.func @transform_4(%arg0: i32, %arg1: i32) -> (i32, i32) {
    %c0_i32 = arith.constant 0 : i32
    %c0_i32_0 = arith.constant 0 : i32
    return %c0_i32, %arg1 : i32, i32
  }
  func.func @transform_5(%arg0: i32, %arg1: i32) -> (i32, i32) {
    %c0_i32 = arith.constant 0 : i32
    return %arg0, %arg1 : i32, i32
  }
}

</mosaic_0001>

<llo_original>
// kernel: tpu_custom_call.1
$region0: #{tpu_custom_call.1}
  #allocation0 [shape = 'u32[]', space=smem, size = 0x4, offset = 0x4, fixed_abs, tag = 'smem constant byte address 0x4 - core index']
  #allocation1 [shape = 'u32[144,128]{1,0:T(1,128)}', space=vmem, size = 0x12000, scoped, tag = 'internal scratch']
  #allocation2 [shape = 'bf16[16,32]{1,0:T(16,128)(2,1)}', space=vmem, size = 0x1000, scoped, tag = 'scratch operand']
  %s0 = inlined_call_operand.hbm [shape: bf16[16,40], index: 0, kind: input, shape index: {}]
  %s1 = inlined_call_operand.hbm [shape: bf16[40,64], index: 1, kind: input, shape index: {}]
  %s2 = inlined_call_operand.vmem [shape: f32[1,64], index: 2, kind: input, shape index: {}]
  %s3 = inlined_call_operand.hbm [shape: bf16[32,128], index: 3, kind: input, shape index: {}]
  %s4 = inlined_call_operand.vmem [shape: f32[1,128], index: 4, kind: input, shape index: {}]
  %s5 = inlined_call_operand.hbm [shape: f32[16,128], index: 5, kind: output, shape index: {}]
  %s6 = sld [smem:[#allocation0]]
  $region46: #{tpu_custom_call.1} parent=0
    _
  %s8 = ssub.s32 1, %s6
  %s9 = scalar_select 0, %s8, %s6
  $region1: #{tpu_custom_call.1} parent=0
    #allocation3 [shape = 'u8[4096]{0}', space=vmem, size = 0x1000, scoped, tag = 'input window, operand 0, single buffered']
    #allocation4 [shape = 's32[1]{0}', space=sflag, size = 0x4, scoped, tag = 'scoped memory for tpu_custom_call.1']
    #allocation5 [shape = 's32[1]{0}', space=sflag, size = 0x4, scoped, tag = 'scoped memory for tpu_custom_call.1']
    #allocation6 [shape = 'u8[10240]{0}', space=vmem, size = 0x2800, scoped, tag = 'input window, operand 1, single buffered']
    #allocation7 [shape = 's32[1]{0}', space=sflag, size = 0x4, scoped, tag = 'scoped memory for tpu_custom_call.1']
    #allocation8 [shape = 'u8[8192]{0}', space=vmem, size = 0x2000, scoped, tag = 'input window, operand 3, single buffered']
    #allocation9 [shape = 'u8[8192]{0}', space=vmem, size = 0x2000, scoped, tag = 'output window, operand 0, single buffered']
    %10 = vsyncpa [#allocation4], 0
    %11 = vsyncpa [#allocation7], 0
    %12 = vsyncpa [#allocation5], 0
    // Predicated region
    $region2: #{tpu_custom_call.1} parent=1 // pred_check
      _
    $region3: #{tpu_custom_call.1} parent=1 // pred_check_branch
      %14 = sbr.rel (0) target = $region5
    $region4: #{tpu_custom_call.1} parent=1 // pred_region
      %s16 = ssub.s32 128, 128
      %17 = vsyncadd [#allocation4], %s16
      %s18 = sshll.u32 [#allocation3], 4
      %s19 = int_to_ptr.vmem [resolvable:$true] %s18
      %24 = dma.hbm_to_vmem [thread:$0]  %s0, 128, %s19, [#allocation4], 64, 64, 4
    $region5: #{tpu_custom_call.1} parent=1 // pred_fallthru
      _
    // Predicated region
    $region6: #{tpu_custom_call.1} parent=1 // pred_check
      _
    $region7: #{tpu_custom_call.1} parent=1 // pred_check_branch
      %26 = sbr.rel (0) target = $region9
    $region8: #{tpu_custom_call.1} parent=1 // pred_region
      %s28 = ssub.s32 320, 320
      %29 = vsyncadd [#allocation7], %s28
      %s30 = sshll.u32 [#allocation6], 4
      %s31 = int_to_ptr.vmem [resolvable:$true] %s30
      %36 = dma.hbm_to_vmem [thread:$0]  %s1, 320, %s31, [#allocation7], 64, 64, 4
    $region9: #{tpu_custom_call.1} parent=1 // pred_fallthru
      _
    // Predicated region
    $region10: #{tpu_custom_call.1} parent=1 // pred_check
      _
    $region11: #{tpu_custom_call.1} parent=1 // pred_check_branch
      %38 = sbr.rel (0) target = $region13
    $region12: #{tpu_custom_call.1} parent=1 // pred_region
      _
    $region13: #{tpu_custom_call.1} parent=1 // pred_fallthru
      _
    // Predicated region
    $region14: #{tpu_custom_call.1} parent=1 // pred_check
      _
    $region15: #{tpu_custom_call.1} parent=1 // pred_check_branch
      %40 = sbr.rel (0) target = $region17
    $region16: #{tpu_custom_call.1} parent=1 // pred_region
      %s42 = ssub.s32 256, 256
      %43 = vsyncadd [#allocation7], %s42
      %s44 = sshll.u32 [#allocation8], 4
      %s45 = int_to_ptr.vmem [resolvable:$true] %s44
      %50 = dma.hbm_to_vmem [thread:$0]  %s3, 256, %s45, [#allocation7], 64, 64, 4
    $region17: #{tpu_custom_call.1} parent=1 // pred_fallthru
      _
    // Predicated region
    $region18: #{tpu_custom_call.1} parent=1 // pred_check
      _
    $region19: #{tpu_custom_call.1} parent=1 // pred_check_branch
      %52 = sbr.rel (0) target = $region21
    $region20: #{tpu_custom_call.1} parent=1 // pred_region
      _
    $region21: #{tpu_custom_call.1} parent=1 // pred_fallthru
      _
    // Predicated region
    $region22: #{tpu_custom_call.1} parent=1 // pred_check
      _
    $region23: #{tpu_custom_call.1} parent=1 // pred_check_branch
      %54 = sbr.rel (0) target = $region25
    $region24: #{tpu_custom_call.1} parent=1 // pred_region
      %55 = dma.done [#allocation4], 128
    $region25: #{tpu_custom_call.1} parent=1 // pred_fallthru
      _
    // Predicated region
    $region26: #{tpu_custom_call.1} parent=1 // pred_check
      _
    $region27: #{tpu_custom_call.1} parent=1 // pred_check_branch
      %57 = sbr.rel (0) target = $region29
    $region28: #{tpu_custom_call.1} parent=1 // pred_region
      %58 = dma.done [#allocation7], 320
    $region29: #{tpu_custom_call.1} parent=1 // pred_fallthru
      _
    // Predicated region
    $region30: #{tpu_custom_call.1} parent=1 // pred_check
      _
    $region31: #{tpu_custom_call.1} parent=1 // pred_check_branch
      %60 = sbr.rel (0) target = $region33
    $region32: #{tpu_custom_call.1} parent=1 // pred_region
      %61 = dma.done [#allocation7], 256
    $region33: #{tpu_custom_call.1} parent=1 // pred_fallthru
      _
    %p63 = scmp.eq.s32.totalorder 0, 0
    // Predicated region
    $region34: #{tpu_custom_call.1} parent=1 // pred_check
      %p64 = pneg %p63
    $region35: #{tpu_custom_call.1} parent=1 // pred_check_branch
      %66 = sbr.rel (%p64) target = $region37
    $region36: #{tpu_custom_call.1} parent=1 // pred_region
      %v67 = vld [vmem:[#allocation3] sm:$0xf]
      %v68 = vld [vmem:[#allocation3 + $0x4] sm:$0xf]
      %v69 = vld [vmem:[#allocation6] sm:$0xf]
      %v70 = vld [vmem:[#allocation6 + $0x4] sm:$0xf]
      %v71 = vld [vmem:[#allocation6 + $0x8] sm:$0xf]
      %v72 = vld [vmem:[#allocation6 + $0xc] sm:$0xf]
      %v73 = vld [vmem:[#allocation6 + $0x10] sm:$0xf]
      %v74 = vld [vmem:[%s2] sm:$0x1]
      %v76 = vlaneseq
      %v77 = vshrl.u32 %v76, 7
      %v78 = vsub.s32 0, %v77
      %v79 = vrot.slane %v74, %v78
      %v83 = vunpack.c.l.b16 %v67
      %v84 = vunpack.c.l.b16 %v68
      %v85 = vpack.c.b16 %v84, %v83
      %v91 = vunpack.c.l.b16 %v69
      %v92 = vunpack.c.l.b16 %v70
      %v93 = vunpack.c.l.b16 %v71
      %v94 = vunpack.c.l.b16 %v72
      %v95 = vunpack.c.l.b16 %v73
      %v96 = vpack.c.b16 %v92, %v91
      %v97 = vpack.c.b16 %v94, %v93
      %v98 = vpack.c.b16 %v95, %v95
      %vm101 = vcmask 326656
      %v103 = vsel %vm101, %v85, 0
      %vm105 = vcmask 1043456
      %v107 = vsel %vm105, %v98, 0
      %109 = vmatprep.subr.bf16.mxu0 0
      %110 = vmatpush1.bf16.msra.mxu0 %v96
      %111 = vmatprep.subr.bf16.mxu0 0
      %112 = vmatpush1.bf16.msra.mxu0 %v97
      %113 = vmatprep.subr.bf16.mxu0 0
      %114 = vmatpush1.bf16.msra.mxu0 %v107
      %115 = vmatprep.subr.bf16.mxu0 0
      %116 = vmatpush1.bf16.msra.mxu0 0
      %117 = vmatprep.subr.bf16.mxu0 0
      %118 = vmatpush1.bf16.msra.mxu0 0
      %119 = vmatprep.subr.bf16.mxu0 0
      %120 = vmatpush1.bf16.msra.mxu0 0
      %121 = vmatprep.subr.bf16.mxu0 0
      %122 = vmatpush1.bf16.msra.mxu0 0
      %123 = vmatprep.subr.bf16.mxu0 0
      %124 = vmatpush1.bf16.msra.mxu0 0
      %125 = vmatprep.subr.bf16.mxu0 0
      %126 = vmatpush1.bf16.msra.mxu0 0
      %127 = vmatprep.subr.bf16.mxu0 0
      %128 = vmatpush1.bf16.msra.mxu0 0
      %129 = vmatprep.subr.bf16.mxu0 0
      %130 = vmatpush1.bf16.msra.mxu0 0
      %131 = vmatprep.subr.bf16.mxu0 0
      %132 = vmatpush1.bf16.msra.mxu0 0
      %133 = vmatprep.subr.bf16.mxu0 0
      %134 = vmatpush1.bf16.msra.mxu0 0
      %135 = vmatprep.subr.bf16.mxu0 0
      %136 = vmatpush1.bf16.msra.mxu0 0
      %137 = vmatprep.subr.bf16.mxu0 0
      %138 = vmatpush1.bf16.msra.mxu0 0
      %139 = vmatprep.subr.bf16.mxu0 0
      %140 = vmatpush1.bf16.msra.mxu0 0
      %141 = vmatprep.mubr.bf16.mxu0 0
      %142 = vmatmul.mubr.bf16.gmra.mrb[0].mxu0 %v103
      %v143 = vpop.f32.mrb[0].mxu0
      %v144 = vadd.f32 %v79, %v143
      %v145 = vpop.f32.mrb[0].mxu0
      %v146 = vpop.f32.mrb[0].mxu0
      %v147 = vadd.f32 %v79, %v146
      %v148 = vpop.f32.mrb[0].mxu0
      %149 = vdwg.mxu0
      %v150 = vunpack.c.l.bf16 %v67
      %v151 = vunpack.c.l.bf16 %v68
      %v152 = vxor.u32 %v144, 2147483648
      %v153 = vxor.u32 %v147, 2147483648
      %v154 = vmul.f32 %v152, 1.442695
      %v155 = vpow.pop %v154
      %v156 = vmul.f32 %v153, 1.442695
      %v157 = vpow.pop %v156
      %v158 = vadd.f32 %v155, 1.0
      %v159 = vadd.f32 %v157, 1.0
      %v160 = vrcp.pop %v158
      %v161 = vmul.f32 1.0, %v160
      %v162 = vrcp.pop %v159
      %v163 = vmul.f32 1.0, %v162
      %v164 = vmul.f32 %v161, %v150
      %v165 = vmul.f32 %v163, %v151
      %v166 = vsub.f32 1.0, %v161
      %v167 = vsub.f32 1.0, %v163
      %170 = vrot.lane.b32.xlu0 %v144, 96
      %v171 = vpop.permute.xlu0 %170
      %172 = vrot.lane.b32.xlu0 %v147, 96
      %v173 = vpop.permute.xlu0 %172
      %v176 = vmul.f32 %v166, %v171
      %v177 = vmul.f32 %v167, %v173
      %v178 = vadd.f32 %v164, %v176
      %v179 = vadd.f32 %v165, %v177
      %v180 = vpack.c.bf16 %v179, %v178
      %vm181 = vcmask 261120
      %182 = vst.msk [vmem:[#allocation2] sm:$0xff] %vm181, %v180
    $region37: #{tpu_custom_call.1} parent=1 // pred_fallthru
      _
    %v183 = vld [vmem:[#allocation2] sm:$0xff]
    %v184 = vld [vmem:[#allocation8] sm:$0xf]
    %v185 = vld [vmem:[#allocation8 + $0x4] sm:$0xf]
    %v186 = vld [vmem:[#allocation8 + $0x8] sm:$0xf]
    %v187 = vld [vmem:[#allocation8 + $0xc] sm:$0xf]
    %v188 = vld [vmem:[%s4] sm:$0x1]
    %v190 = vlaneseq
    %v191 = vshrl.u32 %v190, 7
    %v192 = vsub.s32 0, %v191
    %v193 = vrot.slane %v188, %v192
    %v199 = vunpack.c.l.b16 %v184
    %v200 = vunpack.c.l.b16 %v185
    %v201 = vunpack.c.l.b16 %v186
    %v202 = vunpack.c.l.b16 %v187
    %v203 = vpack.c.b16 %v200, %v199
    %v204 = vpack.c.b16 %v202, %v201
    %vm207 = vcmask 261120
    %v209 = vsel %vm207, %v183, 0
    %211 = vmatprep.subr.bf16.mxu0 0
    %212 = vmatpush1.bf16.msra.mxu0 %v203
    %213 = vmatprep.subr.bf16.mxu0 0
    %214 = vmatpush1.bf16.msra.mxu0 %v204
    %215 = vmatprep.subr.bf16.mxu0 0
    %216 = vmatpush1.bf16.msra.mxu0 0
    %217 = vmatprep.subr.bf16.mxu0 0
    %218 = vmatpush1.bf16.msra.mxu0 0
    %219 = vmatprep.subr.bf16.mxu0 0
    %220 = vmatpush1.bf16.msra.mxu0 0
    %221 = vmatprep.subr.bf16.mxu0 0
    %222 = vmatpush1.bf16.msra.mxu0 0
    %223 = vmatprep.subr.bf16.mxu0 0
    %224 = vmatpush1.bf16.msra.mxu0 0
    %225 = vmatprep.subr.bf16.mxu0 0
    %226 = vmatpush1.bf16.msra.mxu0 0
    %227 = vmatprep.subr.bf16.mxu0 0
    %228 = vmatpush1.bf16.msra.mxu0 0
    %229 = vmatprep.subr.bf16.mxu0 0
    %230 = vmatpush1.bf16.msra.mxu0 0
    %231 = vmatprep.subr.bf16.mxu0 0
    %232 = vmatpush1.bf16.msra.mxu0 0
    %233 = vmatprep.subr.bf16.mxu0 0
    %234 = vmatpush1.bf16.msra.mxu0 0
    %235 = vmatprep.subr.bf16.mxu0 0
    %236 = vmatpush1.bf16.msra.mxu0 0
    %237 = vmatprep.subr.bf16.mxu0 0
    %238 = vmatpush1.bf16.msra.mxu0 0
    %239 = vmatprep.subr.bf16.mxu0 0
    %240 = vmatpush1.bf16.msra.mxu0 0
    %241 = vmatprep.subr.bf16.mxu0 0
    %242 = vmatpush1.bf16.msra.mxu0 0
    %243 = vmatprep.mubr.bf16.mxu0 0
    %244 = vmatmul.mubr.bf16.gmra.mrb[0].mxu0 %v209
    %v245 = vpop.f32.mrb[0].mxu0
    %v246 = vadd.f32 %v193, %v245
    %v247 = vpop.f32.mrb[0].mxu0
    %v248 = vpop.f32.mrb[0].mxu0
    %v249 = vadd.f32 %v193, %v248
    %v250 = vpop.f32.mrb[0].mxu0
    %251 = vdwg.mxu0
    %252 = vst [vmem:[#allocation9] sm:$0xff] %v246
    %253 = vst [vmem:[#allocation9 + $0x8] sm:$0xff] %v249
    // Predicated region
    $region38: #{tpu_custom_call.1} parent=1 // pred_check
      _
    $region39: #{tpu_custom_call.1} parent=1 // pred_check_branch
      %255 = sbr.rel (0) target = $region41
    $region40: #{tpu_custom_call.1} parent=1 // pred_region
      %s257 = ssub.s32 256, 256
      %258 = vsyncadd [#allocation5], %s257
      %s259 = sshll.u32 [#allocation9], 4
      %s260 = int_to_ptr.vmem [resolvable:$true] %s259
      %265 = dma.vmem_to_hbm [thread:$0]  %s260, 256, %s5, [#allocation5], 128, 128, 8
    $region41: #{tpu_custom_call.1} parent=1 // pred_fallthru
      _
    // Predicated region
    $region42: #{tpu_custom_call.1} parent=1 // pred_check
      _
    $region43: #{tpu_custom_call.1} parent=1 // pred_check_branch
      %267 = sbr.rel (0) target = $region45
    $region44: #{tpu_custom_call.1} parent=1 // pred_region
      %268 = dma.done [#allocation5], 256
    $region45: #{tpu_custom_call.1} parent=1 // pred_fallthru
      _
    %269 = vsyncpa [#allocation4], 1
    %270 = vsyncpa [#allocation7], 1
    %271 = vsyncpa [#allocation5], 1

</llo_original>
